<compile_context>
chip_gen: v6e
topology: v6e:2x2x1
jax: 0.10.0
libtpu: 0.0.40
codegen_flags: <defaults>
</compile_context>

<pallas_src>
import jax
import jax.numpy as jnp
from jax.experimental import pallas as pl
from jax.experimental.pallas import tpu as pltpu


# ------------------------------- kernels ------------------------------------

def _gated_tile(x_ref, w13_ref, w2_ref):
    # One MXU pass computes BOTH gate projections for this d_ff tile
    # (w13[j] = [w1 tile | w3 tile] along lanes); bf16 inputs, f32 accumulate.
    h = jnp.dot(x_ref[...], w13_ref[0], preferred_element_type=jnp.float32)  # (tm, 2*tn)
    tn = h.shape[-1] // 2
    h1 = h[:, :tn]                 # tn % 128 == 0 -> lane-aligned, free slices
    h3 = h[:, tn:]
    gated = (h1 * jax.nn.sigmoid(h1)) * h3          # SiLU(h1) * h3 in f32 (VPU/EUP)
    return jnp.dot(gated.astype(w2_ref.dtype), w2_ref[...],
                   preferred_element_type=jnp.float32)


def _swiglu_kernel_f32out(x_ref, w13_ref, w2_ref, o_ref):
    # f32 output: accumulate directly into the resident output block (no scratch).
    j = pl.program_id(1)

    @pl.when(j == 0)
    def _init():
        o_ref[...] = jnp.zeros_like(o_ref)

    o_ref[...] += _gated_tile(x_ref, w13_ref, w2_ref)


def _swiglu_kernel_lowp_out(x_ref, w13_ref, w2_ref, o_ref, acc_ref):
    # Low-precision output: f32 scratch accumulator, cast once at the end.
    j = pl.program_id(1)

    @pl.when(j == 0)
    def _init():
        acc_ref[...] = jnp.zeros_like(acc_ref)

    acc_ref[...] += _gated_tile(x_ref, w13_ref, w2_ref)

    @pl.when(j == pl.num_programs(1) - 1)
    def _finalize():
        o_ref[...] = acc_ref[...].astype(o_ref.dtype)


# ------------------------------ wrapper --------------------------------------

def _round_up(a, b):
    return -(-a // b) * b


def _cdiv(a, b):
    return -(-a // b)


def _pick_tn(d_ff, tn_max):
    """Largest tile (<= tn_max) dividing d_ff; prefer 256-aligned, else 128.

    d_ff must already be a multiple of 128 (prepare pads it)."""
    tn_max = max(128, min(tn_max, d_ff))
    for align in (256, 128):
        tn = (tn_max // align) * align
        while tn >= align:
            if d_ff % tn == 0:
                return tn
            tn -= align
    return 128  # unreachable: d_ff is a multiple of 128


def prepare_swiglu_weights(w1, w2, w3, *, tn=512, compute_dtype=jnp.bfloat16):
    """One-time (module-init) weight preparation.

    Returns (w13, w2p):
      w13[j] = [w1[:, j*tn:(j+1)*tn] | w3[:, j*tn:(j+1)*tn]]   (nf, d_model, 2*tn)
      w2p    = (zero-padded) w2                                (d_ff_pad, d_model)
    both cast to `compute_dtype` (bf16 -> bf16 MXU path with f32 accumulation).
    Zero padding of d_ff is exact: SiLU(0)*0 = 0 and the padded w2 rows are 0.
    """
    d_model, d_ff = w1.shape
    assert w3.shape == (d_model, d_ff) and w2.shape == (d_ff, d_model)
    d_ff_pad = _round_up(d_ff, 128)
    if d_ff_pad != d_ff:
        pad = d_ff_pad - d_ff
        w1 = jnp.pad(w1, ((0, 0), (0, pad)))
        w3 = jnp.pad(w3, ((0, 0), (0, pad)))
        w2 = jnp.pad(w2, ((0, pad), (0, 0)))
    tn = _pick_tn(d_ff_pad, tn)
    nf = d_ff_pad // tn
    w13 = jnp.concatenate(
        [w1.reshape(d_model, nf, tn), w3.reshape(d_model, nf, tn)], axis=-1)
    w13 = jnp.transpose(w13, (1, 0, 2)).astype(compute_dtype)   # (nf, d_model, 2*tn)
    w2p = w2.astype(compute_dtype)
    return w13, w2p


def swiglu_apply(x, w13, w2p, *, out_dtype=None, tm=256,
                 vmem_limit_bytes=56 * 1024 * 1024):
    """x: [..., d_model]; w13: (nf, d_model, 2*tn); w2p: (nf*tn, d_model)."""
    orig_shape = x.shape
    d_model = orig_shape[-1]
    nf, dm_w, two_tn = w13.shape
    assert dm_w == d_model
    tn = two_tn // 2
    d_ff_pad = nf * tn
    assert w2p.shape == (d_ff_pad, d_model)
    out_dtype = out_dtype if out_dtype is not None else x.dtype
    compute_dtype = w13.dtype

    x2 = x.reshape(-1, d_model).astype(compute_dtype)
    M = x2.shape[0]

    # Row tiling: minimize padding, keep >= 2 tiles (when possible) so the
    # "parallel" axis can shard across both TensorCores on v7x.
    ntiles = _cdiv(M, max(8, tm))
    if ntiles == 1 and M > 8:
        ntiles = 2
    tm = _round_up(_cdiv(M, ntiles), 8)
    M_pad = ntiles * tm
    if M_pad != M:
        # TODO(synk): for large ragged M, pad at a higher level or mask-write the
        # last tile in-kernel instead of a full jnp.pad round-trip.
        x2 = jnp.pad(x2, ((0, M_pad - M), (0, 0)))

    f32_out = jnp.dtype(out_dtype) == jnp.dtype(jnp.float32)
    kernel = _swiglu_kernel_f32out if f32_out else _swiglu_kernel_lowp_out
    scratch = [] if f32_out else [pltpu.VMEM((tm, d_model), jnp.float32)]

    wbytes = jnp.dtype(compute_dtype).itemsize
    obytes = jnp.dtype(out_dtype).itemsize
    cost = pl.CostEstimate(
        flops=int(6 * M_pad * d_model * d_ff_pad),
        transcendentals=int(M_pad * d_ff_pad),
        bytes_accessed=int(ntiles * 3 * d_model * d_ff_pad * wbytes
                           + M_pad * d_model * (wbytes + obytes)),
    )

    out = pl.pallas_call(
        kernel,
        out_shape=jax.ShapeDtypeStruct((M_pad, d_model), out_dtype),
        grid_spec=pltpu.PrefetchScalarGridSpec(
            num_scalar_prefetch=0,
            grid=(ntiles, nf),
            in_specs=[
                pl.BlockSpec((tm, d_model), lambda i, j: (i, 0)),            # x rows
                # TODO(synk): on v6e (128 MiB VMEM) consider pipeline_mode=pl.Buffered(3)
                # on the two weight streams if DMA waits are exposed; not on v7x.
                pl.BlockSpec((1, d_model, two_tn), lambda i, j: (j, 0, 0)),  # fused w1|w3
                pl.BlockSpec((tn, d_model), lambda i, j: (j, 0)),            # w2 tile
            ],
            out_specs=pl.BlockSpec((tm, d_model), lambda i, j: (i, 0)),
            scratch_shapes=scratch,
        ),
        compiler_params=pltpu.CompilerParams(
            dimension_semantics=("parallel", "arbitrary"),
            vmem_limit_bytes=vmem_limit_bytes,
        ),
        cost_estimate=cost,
    )(x2, w13, w2p)

    return out[:M].reshape(orig_shape)


def swiglu(x, w1, w2, w3, *, tm=256, tn=512, compute_dtype=jnp.bfloat16,
           vmem_limit_bytes=56 * 1024 * 1024):
    """Convenience one-shot API (module usage should cache prepare_swiglu_weights)."""
    w13, w2p = prepare_swiglu_weights(w1, w2, w3, tn=tn, compute_dtype=compute_dtype)
    return swiglu_apply(x, w13, w2p, out_dtype=x.dtype, tm=tm,
                        vmem_limit_bytes=vmem_limit_bytes)


# -------------------------------- tests --------------------------------------

if __name__ == "__main__":
    key = jax.random.PRNGKey(0)

    def ref_swiglu(x, w1, w2, w3):
        hp = jax.lax.Precision.HIGHEST
        xf = x.astype(jnp.float32)
        h1 = jnp.matmul(xf, w1, precision=hp)
        h3 = jnp.matmul(xf, w3, precision=hp)
        return jnp.matmul((h1 * jax.nn.sigmoid(h1)) * h3, w2, precision=hp)

    def check(out, ref, name, rel=2e-2):
        err = float(jnp.max(jnp.abs(out.astype(jnp.float32) - ref)))
        scale = float(jnp.max(jnp.abs(ref))) + 1e-6
        assert err <= rel * scale, f"{name}: relative error {err / scale:.4f} too large"

    # --- Test 1: small module-like shape (2 M-tiles after the v7x clamp). -----
    batch, seq, d_model, d_ff = 2, 8, 128, 256
    kx, k1, k2, k3, key = jax.random.split(key, 5)
    x = jax.random.normal(kx, (batch, seq, d_model), dtype=jnp.float32)
    # Linear weights mimic torch.randn(input_size, output_size).
    w1 = jax.random.normal(k1, (d_model, d_ff), dtype=jnp.float32)
    w2 = jax.random.normal(k2, (d_ff, d_model), dtype=jnp.float32)
    w3 = jax.random.normal(k3, (d_model, d_ff), dtype=jnp.float32)

    out = jax.block_until_ready(swiglu(x, w1, w2, w3))
    assert out.shape == (batch, seq, d_model)
    check(out, ref_swiglu(x, w1, w2, w3), "test1")

    # --- Test 2: ragged M (padding path) + multi-step d_ff reduction axis. ----
    batch, seq, d_model, d_ff = 3, 100, 256, 640
    kx, k1, k2, k3, key = jax.random.split(key, 5)
    x = jax.random.normal(kx, (batch, seq, d_model), dtype=jnp.float32)
    w1 = jax.random.normal(k1, (d_model, d_ff), dtype=jnp.float32) * 0.05
    w2 = jax.random.normal(k2, (d_ff, d_model), dtype=jnp.float32) * 0.05
    w3 = jax.random.normal(k3, (d_model, d_ff), dtype=jnp.float32) * 0.05

    out = jax.block_until_ready(swiglu(x, w1, w2, w3, tm=128, tn=256))
    assert out.shape == (batch, seq, d_model)
    check(out, ref_swiglu(x, w1, w2, w3), "test2")

    # --- Test 3: bf16 activations/output (exercises the scratch-accumulator path).
    xb = x.astype(jnp.bfloat16)
    out = jax.block_until_ready(swiglu(xb, w1, w2, w3, tm=128, tn=256))
    assert out.dtype == jnp.bfloat16 and out.shape == (batch, seq, d_model)
    check(out, ref_swiglu(xb, w1, w2, w3), "test3", rel=5e-2)

    print("KERNEL_OK")
</pallas_src>

<mosaic_0001>
module attributes {stable_mosaic.version = 11 : i64} {
  func.func @_swiglu_kernel_f32out(%arg0: i32, %arg1: i32, %arg2: memref<8x128xbf16, #tpu.memory_space<vmem>>, %arg3: memref<1x128x512xbf16, #tpu.memory_space<vmem>>, %arg4: memref<256x128xbf16, #tpu.memory_space<vmem>>, %arg5: memref<8x128xf32, #tpu.memory_space<vmem>>) attributes {dimension_semantics = [#tpu.dimension_semantics<parallel>, #tpu.dimension_semantics<arbitrary>], iteration_bounds = array<i64: 2, 1>, scalar_prefetch = 0 : i64, scratch_operands = 0 : i64, tpu.core_type = #tpu.core_type<tc>, window_params = [{transform_indices = @transform_0, window_bounds = array<i64: 8, 128>}, {transform_indices = @transform_1, window_bounds = array<i64: 1, 128, 512>}, {transform_indices = @transform_2, window_bounds = array<i64: 256, 128>}, {transform_indices = @transform_3, window_bounds = array<i64: 8, 128>}]} {
    %c0_i32 = arith.constant 0 : i32
    %0 = arith.cmpi eq, %arg1, %c0_i32 : i32
    %1 = arith.extui %0 : i1 to i32
    %c0_i32_0 = arith.constant 0 : i32
    %2 = arith.cmpi ne, %1, %c0_i32_0 : i32
    scf.if %2 {
      %cst_13 = arith.constant 0.000000e+00 : f32
      %22 = vector.broadcast %cst_13 : f32 to vector<8x128xf32>
      %c0_14 = arith.constant 0 : index
      %c0_15 = arith.constant 0 : index
      %23 = vector.load %arg5[%c0_14, %c0_15] : memref<8x128xf32, #tpu.memory_space<vmem>>, vector<8x128xf32>
      tpu.vector_store %arg5[%c0_14, %c0_15], %22 {strides = array<i32>} : memref<8x128xf32, #tpu.memory_space<vmem>>, vector<8x128xf32>,
    } else {
    }
    %c0 = arith.constant 0 : index
    %c0_1 = arith.constant 0 : index
    %3 = vector.load %arg5[%c0, %c0_1] : memref<8x128xf32, #tpu.memory_space<vmem>>, vector<8x128xf32>
    %c0_2 = arith.constant 0 : index
    %c0_3 = arith.constant 0 : index
    %4 = vector.load %arg2[%c0_2, %c0_3] : memref<8x128xbf16, #tpu.memory_space<vmem>>, vector<8x128xbf16>
    %c0_4 = arith.constant 0 : index
    %c0_5 = arith.constant 0 : index
    %c0_6 = arith.constant 0 : index
    %5 = vector.load %arg3[%c0_4, %c0_5, %c0_6] : memref<1x128x512xbf16, #tpu.memory_space<vmem>>, vector<1x128x512xbf16>
    %6 = vector.shape_cast %5 : vector<1x128x512xbf16> to vector<128x512xbf16>
    %cst = arith.constant dense<0.000000e+00> : vector<8x512xf32>
    %7 = tpu.matmul %4, %6, %cst {dimension_numbers = #tpu.dot_dimension_numbers<[1], [0], [0], [1], [0, 0, 1, 1], [], []>} : vector<8x128xbf16>, vector<128x512xbf16>, vector<8x512xf32> -> vector<8x512xf32>
    %8 = vector.extract_strided_slice %7 {offsets = [0, 0], sizes = [8, 256], strides = [1, 1]} : vector<8x512xf32> to vector<8x256xf32>
    %9 = vector.extract_strided_slice %7 {offsets = [0, 256], sizes = [8, 256], strides = [1, 1]} : vector<8x512xf32> to vector<8x256xf32>
    %10 = arith.negf %8 : vector<8x256xf32>
    %11 = math.exp %10 : vector<8x256xf32>
    %cst_7 = arith.constant 1.000000e+00 : f32
    %12 = vector.broadcast %cst_7 : f32 to vector<8x256xf32>
    %13 = arith.addf %12, %11 : vector<8x256xf32>
    %14 = arith.divf %12, %13 : vector<8x256xf32>
    %15 = arith.mulf %8, %14 : vector<8x256xf32>
    %16 = arith.mulf %15, %9 : vector<8x256xf32>
    %17 = arith.truncf %16 : vector<8x256xf32> to vector<8x256xbf16>
    %c0_8 = arith.constant 0 : index
    %c0_9 = arith.constant 0 : index
    %18 = vector.load %arg4[%c0_8, %c0_9] : memref<256x128xbf16, #tpu.memory_space<vmem>>, vector<256x128xbf16>
    %cst_10 = arith.constant dense<0.000000e+00> : vector<8x128xf32>
    %19 = tpu.matmul %17, %18, %cst_10 {dimension_numbers = #tpu.dot_dimension_numbers<[1], [0], [0], [1], [0, 0, 1, 1], [], []>} : vector<8x256xbf16>, vector<256x128xbf16>, vector<8x128xf32> -> vector<8x128xf32>
    %20 = arith.addf %3, %19 : vector<8x128xf32>
    %c0_11 = arith.constant 0 : index
    %c0_12 = arith.constant 0 : index
    %21 = vector.load %arg5[%c0_11, %c0_12] : memref<8x128xf32, #tpu.memory_space<vmem>>, vector<8x128xf32>
    tpu.vector_store %arg5[%c0_11, %c0_12], %20 {strides = array<i32>} : memref<8x128xf32, #tpu.memory_space<vmem>>, vector<8x128xf32>,
    return
  }
  func.func @transform_0(%arg0: i32, %arg1: i32) -> (i32, i32) {
    %c0_i32 = arith.constant 0 : i32
    %c0_i32_0 = arith.constant 0 : i32
    return %arg0, %c0_i32 : i32, i32
  }
  func.func @transform_1(%arg0: i32, %arg1: i32) -> (i32, i32, i32) {
    %c0_i32 = arith.constant 0 : i32
    %c0_i32_0 = arith.constant 0 : i32
    %c0_i32_1 = arith.constant 0 : i32
    return %arg1, %c0_i32, %c0_i32_0 : i32, i32, i32
  }
  func.func @transform_2(%arg0: i32, %arg1: i32) -> (i32, i32) {
    %c0_i32 = arith.constant 0 : i32
    %c0_i32_0 = arith.constant 0 : i32
    return %arg1, %c0_i32 : i32, i32
  }
  func.func @transform_3(%arg0: i32, %arg1: i32) -> (i32, i32) {
    %c0_i32 = arith.constant 0 : i32
    %c0_i32_0 = arith.constant 0 : i32
    return %arg0, %c0_i32 : i32, i32
  }
}

</mosaic_0001>

<llo_original>
// kernel: tpu_custom_call.1
$region0: #{tpu_custom_call.1}
  #allocation0 [shape = 'u32[]', space=smem, size = 0x4, offset = 0x4, fixed_abs, tag = 'smem constant byte address 0x4 - core index']
  #allocation1 [shape = 'u32[144,128]{1,0:T(1,128)}', space=vmem, size = 0x12000, scoped, tag = 'internal scratch']
  %s0 = inlined_call_operand.hbm [shape: bf16[16,128], index: 0, kind: input, shape index: {}]
  %s1 = inlined_call_operand.hbm [shape: bf16[1,128,512], index: 1, kind: input, shape index: {}]
  %s2 = inlined_call_operand.hbm [shape: bf16[256,128], index: 2, kind: input, shape index: {}]
  %s3 = inlined_call_operand.hbm [shape: f32[16,128], index: 3, kind: output, shape index: {}]
  %s4 = sld [smem:[#allocation0]]
  $region61: #{tpu_custom_call.1} parent=0
    _
  %s6 = ssub.s32 1, %s4
  %s7 = scalar_select 0, %s6, %s4
  $region1: #{tpu_custom_call.1} parent=0
    #allocation2 [shape = 'u8[4096]{0}', space=vmem, size = 0x1000, scoped, tag = 'input window, operand 0']
    #allocation3 [shape = 's32[2]{0}', space=sflag, size = 0x8, scoped, tag = 'scoped memory for tpu_custom_call.1']
    #allocation4 [shape = 's32[2]{0}', space=sflag, size = 0x8, scoped, tag = 'scoped memory for tpu_custom_call.1']
    #allocation5 [shape = 'u8[131072]{0}', space=vmem, size = 0x20000, scoped, tag = 'input window, operand 1, single buffered']
    #allocation6 [shape = 's32[1]{0}', space=sflag, size = 0x4, scoped, tag = 'scoped memory for tpu_custom_call.1']
    #allocation7 [shape = 'u8[65536]{0}', space=vmem, size = 0x10000, scoped, tag = 'input window, operand 2, single buffered']
    #allocation8 [shape = 'u8[8192]{0}', space=vmem, size = 0x2000, scoped, tag = 'output window, operand 0']
    %8 = vsyncpa [#allocation3], 0
    %s9 = scalar_lea.sflag [#allocation3], 1
    %10 = vsyncpa %s9, 0
    %11 = vsyncpa [#allocation6], 0
    %12 = vsyncpa [#allocation4], 0
    %s13 = scalar_lea.sflag [#allocation4], 1
    %14 = vsyncpa %s13, 0
    loop: start=0, step=1, limit=4
    $region2: #{tpu_custom_call.1} parent=1 // loop_pre_header
      _
    $region3: #{tpu_custom_call.1} parent=1 // loop_header
      %s16 = sphi 0, %s20
      %p17 = scmp.ge.s32.totalorder %s16, 4
      %s23 = sphi 0, %s35
      %s24 = sphi 0, %s31
      %s25 = sphi 0, %s23
      %s26 = sphi 0, %s24
      %s27 = sphi 0, %s25
      %s28 = sphi 0, %s26
      %s38 = sphi 0, %s40
      %s41 = sphi 0, %s38
      %s42 = sphi 0, %s41
      %s58 = sphi 0, %s42
      %s64 = sphi 0, %s66
      %s67 = sphi 0, %s64
      %s68 = sphi 0, %s67
      %s84 = sphi 0, %s68
      %s90 = sphi 0, %s92
      %s93 = sphi 0, %s90
      %s94 = sphi 0, %s93
      %s110 = sphi 0, %s94
      %s116 = sphi 0, %s118
      %s119 = sphi 0, %s116
      %s120 = sphi 0, %s119
      %s136 = sphi 0, %s120
    $region4: #{tpu_custom_call.1} parent=1 // loop_header_branch
      %19 = sbr.rel (%p17) target = $region8
    $region5: #{tpu_custom_call.1} parent=1 // loop_body
      %s21 = ssub.s32 %s16, 1
      %s22 = ssub.s32 %s16, 2
      %s29 = sadd.s32 1, %s24
      %p30 = scmp.ge.s32.totalorder %s29, 1
      %s31 = scalar_select %p30, 0, %s29
      %s32 = sadd.s32 1, %s23
      %s33 = scalar_select %p30, %s32, %s23
      %p34 = scmp.ge.s32.totalorder %s33, 2
      %s35 = scalar_select %p34, 0, %s33
      %s36 = ssub.s32 %s23, %s35
      %p37 = scmp.eq.s32.totalorder %s36, 0
      %s39 = sadd.s32 %s38, 1
      %s40 = scalar_select %p37, %s38, %s39
      %p43 = pneg %p37
      %p44 = scmp.eq.s32.totalorder %s16, 1
      %p45 = por %p43, %p44
      %p46 = scmp.ne.s32.totalorder %s38, %s41
      %p47 = scmp.eq.s32.totalorder %s16, 0
      %p48 = por %p46, %p47
      %p49 = scmp.ne.s32.totalorder %s38, %s41
      %p50 = scmp.eq.s32.totalorder %s21, 1
      %p51 = por %p49, %p50
      %p52 = scmp.ne.s32.totalorder %s41, %s42
      %p53 = scmp.eq.s32.totalorder %s21, 0
      %p54 = por %p52, %p53
      %p55 = scmp.ne.s32.totalorder %s41, %s42
      %p56 = scmp.eq.s32.totalorder %s22, 1
      %p57 = por %p55, %p56
      %p59 = scmp.ne.s32.totalorder %s42, %s58
      %p60 = scmp.eq.s32.totalorder %s22, 0
      %p61 = por %p59, %p60
      %s62 = ssub.s32 %s24, %s31
      %p63 = scmp.eq.s32.totalorder %s62, 0
      %s65 = sadd.s32 %s64, 1
      %s66 = scalar_select %p63, %s64, %s65
      %p69 = pneg %p63
      %p70 = scmp.eq.s32.totalorder %s16, 1
      %p71 = por %p69, %p70
      %p72 = scmp.ne.s32.totalorder %s64, %s67
      %p73 = scmp.eq.s32.totalorder %s16, 0
      %p74 = por %p72, %p73
      %p75 = scmp.ne.s32.totalorder %s64, %s67
      %p76 = scmp.eq.s32.totalorder %s21, 1
      %p77 = por %p75, %p76
      %p78 = scmp.ne.s32.totalorder %s67, %s68
      %p79 = scmp.eq.s32.totalorder %s21, 0
      %p80 = por %p78, %p79
      %p81 = scmp.ne.s32.totalorder %s67, %s68
      %p82 = scmp.eq.s32.totalorder %s22, 1
      %p83 = por %p81, %p82
      %p85 = scmp.ne.s32.totalorder %s68, %s84
      %p86 = scmp.eq.s32.totalorder %s22, 0
      %p87 = por %p85, %p86
      %s88 = ssub.s32 %s24, %s31
      %p89 = scmp.eq.s32.totalorder %s88, 0
      %s91 = sadd.s32 %s90, 1
      %s92 = scalar_select %p89, %s90, %s91
      %p95 = pneg %p89
      %p96 = scmp.eq.s32.totalorder %s16, 1
      %p97 = por %p95, %p96
      %p98 = scmp.ne.s32.totalorder %s90, %s93
      %p99 = scmp.eq.s32.totalorder %s16, 0
      %p100 = por %p98, %p99
      %p101 = scmp.ne.s32.totalorder %s90, %s93
      %p102 = scmp.eq.s32.totalorder %s21, 1
      %p103 = por %p101, %p102
      %p104 = scmp.ne.s32.totalorder %s93, %s94
      %p105 = scmp.eq.s32.totalorder %s21, 0
      %p106 = por %p104, %p105
      %p107 = scmp.ne.s32.totalorder %s93, %s94
      %p108 = scmp.eq.s32.totalorder %s22, 1
      %p109 = por %p107, %p108
      %p111 = scmp.ne.s32.totalorder %s94, %s110
      %p112 = scmp.eq.s32.totalorder %s22, 0
      %p113 = por %p111, %p112
      %s114 = ssub.s32 %s23, %s35
      %p115 = scmp.eq.s32.totalorder %s114, 0
      %s117 = sadd.s32 %s116, 1
      %s118 = scalar_select %p115, %s116, %s117
      %p121 = pneg %p115
      %p122 = scmp.eq.s32.totalorder %s16, 1
      %p123 = por %p121, %p122
      %p124 = scmp.ne.s32.totalorder %s116, %s119
      %p125 = scmp.eq.s32.totalorder %s16, 0
      %p126 = por %p124, %p125
      %p127 = scmp.ne.s32.totalorder %s116, %s119
      %p128 = scmp.eq.s32.totalorder %s21, 1
      %p129 = por %p127, %p128
      %p130 = scmp.ne.s32.totalorder %s119, %s120
      %p131 = scmp.eq.s32.totalorder %s21, 0
      %p132 = por %p130, %p131
      %p133 = scmp.ne.s32.totalorder %s119, %s120
      %p134 = scmp.eq.s32.totalorder %s22, 1
      %p135 = por %p133, %p134
      %p137 = scmp.ne.s32.totalorder %s120, %s136
      %p138 = scmp.eq.s32.totalorder %s22, 0
      %p139 = por %p137, %p138
      %p140 = scmp.le.s32.totalorder 1, %s16
      %p141 = scmp.lt.s32.totalorder %s16, 3
      %p142 = pnand %p140, %p141
      %p143 = pneg %p142
      // Predicated region
      $region9: #{tpu_custom_call.1} parent=5 // pred_check
        _
      $region10: #{tpu_custom_call.1} parent=5 // pred_check_branch
        %145 = sbr.rel (%p142) target = $region12
      $region11: #{tpu_custom_call.1} parent=5 // pred_region
        %s146 = ssub.s32 %s16, 1
        // Predicated region
        $region13: #{tpu_custom_call.1} parent=11 // pred_check
          %p147 = pneg %p80
        $region14: #{tpu_custom_call.1} parent=11 // pred_check_branch
          %149 = sbr.rel (%p147) target = $region16
        $region15: #{tpu_custom_call.1} parent=11 // pred_region
          %s151 = ssub.s32 4096, 4096
          %152 = vsyncadd [#allocation6], %s151
          %s153 = smul.addr %s26, 64
          %s154 = smul.addr %s153, 64
          %s155 = scalar_lea.hbm %s1, %s154
          %s156 = sshll.u32 [#allocation5], 4
          %s157 = int_to_ptr.vmem [resolvable:$true] %s156
          %162 = dma.hbm_to_vmem [thread:$0]  %s155, 4096, %s157, [#allocation6], 256, 256, 16
        $region16: #{tpu_custom_call.1} parent=11 // pred_fallthru
          _
        // Predicated region
        $region17: #{tpu_custom_call.1} parent=11 // pred_check
          %p163 = pneg %p106
        $region18: #{tpu_custom_call.1} parent=11 // pred_check_branch
          %165 = sbr.rel (%p163) target = $region20
        $region19: #{tpu_custom_call.1} parent=11 // pred_region
          %s166 = smul.u32 32, %s26
          %s168 = ssub.s32 2048, 2048
          %169 = vsyncadd [#allocation6], %s168
          %s170 = smul.addr %s166, 64
          %s171 = scalar_lea.hbm %s2, %s170
          %s172 = sshll.u32 [#allocation7], 4
          %s173 = int_to_ptr.vmem [resolvable:$true] %s172
          %178 = dma.hbm_to_vmem [thread:$0]  %s171, 2048, %s173, [#allocation6], 64, 64, 4
        $region20: #{tpu_custom_call.1} parent=11 // pred_fallthru
          _
      $region12: #{tpu_custom_call.1} parent=5 // pred_fallthru
        _
      %p179 = scmp.lt.s32.totalorder %s16, 2
      // Predicated region
      $region21: #{tpu_custom_call.1} parent=5 // pred_check
        %p180 = pneg %p179
      $region22: #{tpu_custom_call.1} parent=5 // pred_check_branch
        %182 = sbr.rel (%p180) target = $region24
      $region23: #{tpu_custom_call.1} parent=5 // pred_region
        // Predicated region
        $region25: #{tpu_custom_call.1} parent=23 // pred_check
          %p183 = pneg %p48
        $region26: #{tpu_custom_call.1} parent=23 // pred_check_branch
          %185 = sbr.rel (%p183) target = $region28
        $region27: #{tpu_custom_call.1} parent=23 // pred_region
          %s186 = sand.u32 %s38, 1
          %s187 = scalar_lea.sflag [#allocation3], %s186
          %s188 = sand.u32 %s38, 1
          %s189 = smul.addr %s188, 4
          %s190 = scalar_lea.vmem [#allocation2], %s189
          %s192 = ssub.s32 64, 64
          %193 = vsyncadd %s187, %s192
          %s194 = smul.addr %s23, 64
          %s195 = scalar_lea.hbm %s0, %s194
          %s197 = sshll.u32 %s190, 4
          %s198 = int_to_ptr.vmem [resolvable:$true] %s197
          %200 = dma.hbm_to_vmem [thread:$0]  %s195, 64, %s198, %s187
        $region28: #{tpu_custom_call.1} parent=23 // pred_fallthru
          _
      $region24: #{tpu_custom_call.1} parent=5 // pred_fallthru
        _
      %p201 = scmp.le.s32.totalorder 1, %s16
      %p202 = scmp.lt.s32.totalorder %s16, 3
      %p203 = pnand %p201, %p202
      %p204 = pneg %p203
      // Predicated region
      $region29: #{tpu_custom_call.1} parent=5 // pred_check
        _
      $region30: #{tpu_custom_call.1} parent=5 // pred_check_branch
        %206 = sbr.rel (%p203) target = $region32
      $region31: #{tpu_custom_call.1} parent=5 // pred_region
        %s207 = ssub.s32 %s16, 1
        %s208 = sand.u32 %s41, 1
        %s209 = scalar_lea.sflag [#allocation3], %s208
        %s210 = sand.u32 %s41, 1
        %s211 = smul.addr %s210, 4
        %s212 = scalar_lea.vmem [#allocation2], %s211
        // Predicated region
        $region33: #{tpu_custom_call.1} parent=31 // pred_check
          %p213 = pneg %p54
        $region34: #{tpu_custom_call.1} parent=31 // pred_check_branch
          %215 = sbr.rel (%p213) target = $region36
        $region35: #{tpu_custom_call.1} parent=31 // pred_region
          %216 = dma.done %s209, 64
        $region36: #{tpu_custom_call.1} parent=31 // pred_fallthru
          _
        // Predicated region
        $region37: #{tpu_custom_call.1} parent=31 // pred_check
          %p217 = pneg %p80
        $region38: #{tpu_custom_call.1} parent=31 // pred_check_branch
          %219 = sbr.rel (%p217) target = $region40
        $region39: #{tpu_custom_call.1} parent=31 // pred_region
          %220 = dma.done [#allocation6], 4096
        $region40: #{tpu_custom_call.1} parent=31 // pred_fallthru
          _
        // Predicated region
        $region41: #{tpu_custom_call.1} parent=31 // pred_check
          %p221 = pneg %p106
        $region42: #{tpu_custom_call.1} parent=31 // pred_check_branch
          %223 = sbr.rel (%p221) target = $region44
        $region43: #{tpu_custom_call.1} parent=31 // pred_region
          %224 = dma.done [#allocation6], 2048
        $region44: #{tpu_custom_call.1} parent=31 // pred_fallthru
          _
        %s225 = sand.u32 %s41, 1
        %s226 = scalar_lea.sflag [#allocation3], %s225
        %s227 = sand.u32 %s41, 1
        %s228 = smul.addr %s227, 4
        %s229 = scalar_lea.vmem [#allocation2], %s228
        %p230 = pneg %p54
        %p231 = pneg %p51
        %p232 = pneg %p80
        %p233 = pneg %p77
        %p234 = pneg %p106
        %p235 = pneg %p103
        %p236 = pneg %p132
        %p237 = pneg %p129
        %s238 = sand.u32 %s119, 1
        %s239 = scalar_lea.sflag [#allocation4], %s238
        %s240 = sand.u32 %s119, 1
        %s241 = smul.addr %s240, 8
        %s242 = scalar_lea.vmem [#allocation8], %s241
        %s243 = smul.u32 32, %s26
        %p245 = scmp.eq.s32.totalorder %s26, 0
        // Predicated region
        $region45: #{tpu_custom_call.1} parent=31 // pred_check
          %p246 = pneg %p245
        $region46: #{tpu_custom_call.1} parent=31 // pred_check_branch
          %248 = sbr.rel (%p246) target = $region48
        $region47: #{tpu_custom_call.1} parent=31 // pred_region
          %249 = vst [vmem:[%s242] sm:$0xff] 0.0
        $region48: #{tpu_custom_call.1} parent=31 // pred_fallthru
          _
        %v250 = vld [vmem:[%s242] sm:$0xff]
        %v251 = vld [vmem:[%s212] sm:$0xf]
        %v252 = vld [vmem:[#allocation5] sm:$0xff]
        %v253 = vld [vmem:[#allocation5 + $0x8] sm:$0xff]
        %v254 = vld [vmem:[#allocation5 + $0x10] sm:$0xff]
        %v255 = vld [vmem:[#allocation5 + $0x18] sm:$0xff]
        %v256 = vld [vmem:[#allocation5 + $0x20] sm:$0xff]
        %v257 = vld [vmem:[#allocation5 + $0x28] sm:$0xff]
        %v258 = vld [vmem:[#allocation5 + $0x30] sm:$0xff]
        %v259 = vld [vmem:[#allocation5 + $0x38] sm:$0xff]
        %v260 = vld [vmem:[#allocation5 + $0x40] sm:$0xff]
        %v261 = vld [vmem:[#allocation5 + $0x48] sm:$0xff]
        %v262 = vld [vmem:[#allocation5 + $0x50] sm:$0xff]
        %v263 = vld [vmem:[#allocation5 + $0x58] sm:$0xff]
        %v264 = vld [vmem:[#allocation5 + $0x60] sm:$0xff]
        %v265 = vld [vmem:[#allocation5 + $0x68] sm:$0xff]
        %v266 = vld [vmem:[#allocation5 + $0x70] sm:$0xff]
        %v267 = vld [vmem:[#allocation5 + $0x78] sm:$0xff]
        %v268 = vld [vmem:[#allocation5 + $0x80] sm:$0xff]
        %v269 = vld [vmem:[#allocation5 + $0x88] sm:$0xff]
        %v270 = vld [vmem:[#allocation5 + $0x90] sm:$0xff]
        %v271 = vld [vmem:[#allocation5 + $0x98] sm:$0xff]
        %v272 = vld [vmem:[#allocation5 + $0xa0] sm:$0xff]
        %v273 = vld [vmem:[#allocation5 + $0xa8] sm:$0xff]
        %v274 = vld [vmem:[#allocation5 + $0xb0] sm:$0xff]
        %v275 = vld [vmem:[#allocation5 + $0xb8] sm:$0xff]
        %v276 = vld [vmem:[#allocation5 + $0xc0] sm:$0xff]
        %v277 = vld [vmem:[#allocation5 + $0xc8] sm:$0xff]
        %v278 = vld [vmem:[#allocation5 + $0xd0] sm:$0xff]
        %v279 = vld [vmem:[#allocation5 + $0xd8] sm:$0xff]
        %v280 = vld [vmem:[#allocation5 + $0xe0] sm:$0xff]
        %v281 = vld [vmem:[#allocation5 + $0xe8] sm:$0xff]
        %v282 = vld [vmem:[#allocation5 + $0xf0] sm:$0xff]
        %v283 = vld [vmem:[#allocation5 + $0xf8] sm:$0xff]
        %v316 = vunpack.c.l.b16 %v252
        %v317 = vunpack.c.h.b16 %v252
        %v318 = vunpack.c.l.b16 %v253
        %v319 = vunpack.c.h.b16 %v253
        %v320 = vunpack.c.l.b16 %v254
        %v321 = vunpack.c.h.b16 %v254
        %v322 = vunpack.c.l.b16 %v255
        %v323 = vunpack.c.h.b16 %v255
        %v324 = vunpack.c.l.b16 %v256
        %v325 = vunpack.c.h.b16 %v256
        %v326 = vunpack.c.l.b16 %v257
        %v327 = vunpack.c.h.b16 %v257
        %v328 = vunpack.c.l.b16 %v258
        %v329 = vunpack.c.h.b16 %v258
        %v330 = vunpack.c.l.b16 %v259
        %v331 = vunpack.c.h.b16 %v259
        %v332 = vunpack.c.l.b16 %v260
        %v333 = vunpack.c.h.b16 %v260
        %v334 = vunpack.c.l.b16 %v261
        %v335 = vunpack.c.h.b16 %v261
        %v336 = vunpack.c.l.b16 %v262
        %v337 = vunpack.c.h.b16 %v262
        %v338 = vunpack.c.l.b16 %v263
        %v339 = vunpack.c.h.b16 %v263
        %v340 = vunpack.c.l.b16 %v264
        %v341 = vunpack.c.h.b16 %v264
        %v342 = vunpack.c.l.b16 %v265
        %v343 = vunpack.c.h.b16 %v265
        %v344 = vunpack.c.l.b16 %v266
        %v345 = vunpack.c.h.b16 %v266
        %v346 = vunpack.c.l.b16 %v267
        %v347 = vunpack.c.h.b16 %v267
        %v348 = vunpack.c.l.b16 %v268
        %v349 = vunpack.c.h.b16 %v268
        %v350 = vunpack.c.l.b16 %v269
        %v351 = vunpack.c.h.b16 %v269
        %v352 = vunpack.c.l.b16 %v270
        %v353 = vunpack.c.h.b16 %v270
        %v354 = vunpack.c.l.b16 %v271
        %v355 = vunpack.c.h.b16 %v271
        %v356 = vunpack.c.l.b16 %v272
        %v357 = vunpack.c.h.b16 %v272
        %v358 = vunpack.c.l.b16 %v273
        %v359 = vunpack.c.h.b16 %v273
        %v360 = vunpack.c.l.b16 %v274
        %v361 = vunpack.c.h.b16 %v274
        %v362 = vunpack.c.l.b16 %v275
        %v363 = vunpack.c.h.b16 %v275
        %v364 = vunpack.c.l.b16 %v276
        %v365 = vunpack.c.h.b16 %v276
        %v366 = vunpack.c.l.b16 %v277
        %v367 = vunpack.c.h.b16 %v277
        %v368 = vunpack.c.l.b16 %v278
        %v369 = vunpack.c.h.b16 %v278
        %v370 = vunpack.c.l.b16 %v279
        %v371 = vunpack.c.h.b16 %v279
        %v372 = vunpack.c.l.b16 %v280
        %v373 = vunpack.c.h.b16 %v280
        %v374 = vunpack.c.l.b16 %v281
        %v375 = vunpack.c.h.b16 %v281
        %v376 = vunpack.c.l.b16 %v282
        %v377 = vunpack.c.h.b16 %v282
        %v378 = vunpack.c.l.b16 %v283
        %v379 = vunpack.c.h.b16 %v283
        %v380 = vpack.c.b16 %v320, %v316
        %v381 = vpack.c.b16 %v321, %v317
        %v382 = vpack.c.b16 %v322, %v318
        %v383 = vpack.c.b16 %v323, %v319
        %v384 = vpack.c.b16 %v328, %v324
        %v385 = vpack.c.b16 %v329, %v325
        %v386 = vpack.c.b16 %v330, %v326
        %v387 = vpack.c.b16 %v331, %v327
        %v388 = vpack.c.b16 %v336, %v332
        %v389 = vpack.c.b16 %v337, %v333
        %v390 = vpack.c.b16 %v338, %v334
        %v391 = vpack.c.b16 %v339, %v335
        %v392 = vpack.c.b16 %v344, %v340
        %v393 = vpack.c.b16 %v345, %v341
        %v394 = vpack.c.b16 %v346, %v342
        %v395 = vpack.c.b16 %v347, %v343
        %v396 = vpack.c.b16 %v352, %v348
        %v397 = vpack.c.b16 %v353, %v349
        %v398 = vpack.c.b16 %v354, %v350
        %v399 = vpack.c.b16 %v355, %v351
        %v400 = vpack.c.b16 %v360, %v356
        %v401 = vpack.c.b16 %v361, %v357
        %v402 = vpack.c.b16 %v362, %v358
        %v403 = vpack.c.b16 %v363, %v359
        %v404 = vpack.c.b16 %v368, %v364
        %v405 = vpack.c.b16 %v369, %v365
        %v406 = vpack.c.b16 %v370, %v366
        %v407 = vpack.c.b16 %v371, %v367
        %v408 = vpack.c.b16 %v376, %v372
        %v409 = vpack.c.b16 %v377, %v373
        %v410 = vpack.c.b16 %v378, %v374
        %v411 = vpack.c.b16 %v379, %v375
        %444 = vmatprep.subr.bf16.mxu0 %v409
        %445 = vmatpush1.bf16.msra.mxu0 %v408
        %446 = vmatprep.subr.bf16.mxu0 %v405
        %447 = vmatpush1.bf16.msra.mxu0 %v404
        %448 = vmatprep.subr.bf16.mxu0 %v401
        %449 = vmatpush1.bf16.msra.mxu0 %v400
        %450 = vmatprep.subr.bf16.mxu0 %v397
        %451 = vmatpush1.bf16.msra.mxu0 %v396
        %452 = vmatprep.subr.bf16.mxu0 %v393
        %453 = vmatpush1.bf16.msra.mxu0 %v392
        %454 = vmatprep.subr.bf16.mxu0 %v389
        %455 = vmatpush1.bf16.msra.mxu0 %v388
        %456 = vmatprep.subr.bf16.mxu0 %v385
        %457 = vmatpush1.bf16.msra.mxu0 %v384
        %458 = vmatprep.subr.bf16.mxu0 %v381
        %459 = vmatpush1.bf16.msra.mxu0 %v380
        %460 = vmatprep.subr.bf16.mxu0 0
        %461 = vmatpush2.bf16.msra.mxu0 0
        %462 = vmatprep.subr.bf16.mxu0 0
        %463 = vmatpush2.bf16.msra.mxu0 0
        %464 = vmatprep.subr.bf16.mxu0 0
        %465 = vmatpush2.bf16.msra.mxu0 0
        %466 = vmatprep.subr.bf16.mxu0 0
        %467 = vmatpush2.bf16.msra.mxu0 0
        %468 = vmatprep.subr.bf16.mxu0 0
        %469 = vmatpush2.bf16.msra.mxu0 0
        %470 = vmatprep.subr.bf16.mxu0 0
        %471 = vmatpush2.bf16.msra.mxu0 0
        %472 = vmatprep.subr.bf16.mxu0 0
        %473 = vmatpush2.bf16.msra.mxu0 0
        %474 = vmatprep.subr.bf16.mxu0 0
        %475 = vmatpush2.bf16.msra.mxu0 0
        %476 = vmatprep.mubr.bf16.mxu0 0
        %477 = vmatmul.mubr.bf16.gmra.mxu0 %v251
        %v478 = vpop.f32.mrf.mxu0
        %v479 = vadd.f32 0.0, %v478
        %v480 = vpop.f32.mrf.mxu0
        %v481 = vadd.f32 0.0, %v480
        %v482 = vpop.f32.mrf.mxu0
        %v483 = vpop.f32.mrf.mxu0
        %484 = vdwg.mxu0
        %485 = vmatprep.subr.bf16.mxu0 %v411
        %486 = vmatpush1.bf16.msra.mxu0 %v410
        %487 = vmatprep.subr.bf16.mxu0 %v407
        %488 = vmatpush1.bf16.msra.mxu0 %v406
        %489 = vmatprep.subr.bf16.mxu0 %v403
        %490 = vmatpush1.bf16.msra.mxu0 %v402
        %491 = vmatprep.subr.bf16.mxu0 %v399
        %492 = vmatpush1.bf16.msra.mxu0 %v398
        %493 = vmatprep.subr.bf16.mxu0 %v395
        %494 = vmatpush1.bf16.msra.mxu0 %v394
        %495 = vmatprep.subr.bf16.mxu0 %v391
        %496 = vmatpush1.bf16.msra.mxu0 %v390
        %497 = vmatprep.subr.bf16.mxu0 %v387
        %498 = vmatpush1.bf16.msra.mxu0 %v386
        %499 = vmatprep.subr.bf16.mxu0 %v383
        %500 = vmatpush1.bf16.msra.mxu0 %v382
        %501 = vmatprep.subr.bf16.mxu0 0
        %502 = vmatpush2.bf16.msra.mxu0 0
        %503 = vmatprep.subr.bf16.mxu0 0
        %504 = vmatpush2.bf16.msra.mxu0 0
        %505 = vmatprep.subr.bf16.mxu0 0
        %506 = vmatpush2.bf16.msra.mxu0 0
        %507 = vmatprep.subr.bf16.mxu0 0
        %508 = vmatpush2.bf16.msra.mxu0 0
        %509 = vmatprep.subr.bf16.mxu0 0
        %510 = vmatpush2.bf16.msra.mxu0 0
        %511 = vmatprep.subr.bf16.mxu0 0
        %512 = vmatpush2.bf16.msra.mxu0 0
        %513 = vmatprep.subr.bf16.mxu0 0
        %514 = vmatpush2.bf16.msra.mxu0 0
        %515 = vmatprep.subr.bf16.mxu0 0
        %516 = vmatpush2.bf16.msra.mxu0 0
        %517 = vmatprep.mubr.bf16.mxu0 0
        %518 = vmatmul.mubr.bf16.gmra.mxu0 %v251
        %v519 = vpop.f32.mrf.mxu0
        %v520 = vadd.f32 0.0, %v519
        %v521 = vpop.f32.mrf.mxu0
        %v522 = vadd.f32 0.0, %v521
        %v523 = vpop.f32.mrf.mxu0
        %v524 = vpop.f32.mrf.mxu0
        %525 = vdwg.mxu0
        %v526 = vxor.u32 %v479, 2147483648
        %v527 = vxor.u32 %v481, 2147483648
        %v528 = vmul.f32 %v526, 1.442695
        %v529 = vpow.pop %v528
        %v530 = vmul.f32 %v527, 1.442695
        %v531 = vpow.pop %v530
        %v532 = vadd.f32 %v529, 1.0
        %v533 = vadd.f32 %v531, 1.0
        %v534 = vrcp.pop %v532
        %v535 = vmul.f32 1.0, %v534
        %v536 = vrcp.pop %v533
        %v537 = vmul.f32 1.0, %v536
        %v538 = vmul.f32 %v479, %v535
        %v539 = vmul.f32 %v481, %v537
        %v540 = vmul.f32 %v538, %v520
        %v541 = vmul.f32 %v539, %v522
        %v542 = vpack.c.bf16 %v540, %v540
        %v543 = vpack.c.bf16 %v541, %v541
        %v544 = vld [vmem:[#allocation7] sm:$0xf]
        %v545 = vld [vmem:[#allocation7 + $0x4] sm:$0xf]
        %v546 = vld [vmem:[#allocation7 + $0x8] sm:$0xf]
        %v547 = vld [vmem:[#allocation7 + $0xc] sm:$0xf]
        %v548 = vld [vmem:[#allocation7 + $0x10] sm:$0xf]
        %v549 = vld [vmem:[#allocation7 + $0x14] sm:$0xf]
        %v550 = vld [vmem:[#allocation7 + $0x18] sm:$0xf]
        %v551 = vld [vmem:[#allocation7 + $0x1c] sm:$0xf]
        %v552 = vld [vmem:[#allocation7 + $0x20] sm:$0xf]
        %v553 = vld [vmem:[#allocation7 + $0x24] sm:$0xf]
        %v554 = vld [vmem:[#allocation7 + $0x28] sm:$0xf]
        %v555 = vld [vmem:[#allocation7 + $0x2c] sm:$0xf]
        %v556 = vld [vmem:[#allocation7 + $0x30] sm:$0xf]
        %v557 = vld [vmem:[#allocation7 + $0x34] sm:$0xf]
        %v558 = vld [vmem:[#allocation7 + $0x38] sm:$0xf]
        %v559 = vld [vmem:[#allocation7 + $0x3c] sm:$0xf]
        %v560 = vld [vmem:[#allocation7 + $0x40] sm:$0xf]
        %v561 = vld [vmem:[#allocation7 + $0x44] sm:$0xf]
        %v562 = vld [vmem:[#allocation7 + $0x48] sm:$0xf]
        %v563 = vld [vmem:[#allocation7 + $0x4c] sm:$0xf]
        %v564 = vld [vmem:[#allocation7 + $0x50] sm:$0xf]
        %v565 = vld [vmem:[#allocation7 + $0x54] sm:$0xf]
        %v566 = vld [vmem:[#allocation7 + $0x58] sm:$0xf]
        %v567 = vld [vmem:[#allocation7 + $0x5c] sm:$0xf]
        %v568 = vld [vmem:[#allocation7 + $0x60] sm:$0xf]
        %v569 = vld [vmem:[#allocation7 + $0x64] sm:$0xf]
        %v570 = vld [vmem:[#allocation7 + $0x68] sm:$0xf]
        %v571 = vld [vmem:[#allocation7 + $0x6c] sm:$0xf]
        %v572 = vld [vmem:[#allocation7 + $0x70] sm:$0xf]
        %v573 = vld [vmem:[#allocation7 + $0x74] sm:$0xf]
        %v574 = vld [vmem:[#allocation7 + $0x78] sm:$0xf]
        %v575 = vld [vmem:[#allocation7 + $0x7c] sm:$0xf]
        %v608 = vunpack.c.l.b16 %v544
        %v609 = vunpack.c.l.b16 %v545
        %v610 = vunpack.c.l.b16 %v546
        %v611 = vunpack.c.l.b16 %v547
        %v612 = vunpack.c.l.b16 %v548
        %v613 = vunpack.c.l.b16 %v549
        %v614 = vunpack.c.l.b16 %v550
        %v615 = vunpack.c.l.b16 %v551
        %v616 = vunpack.c.l.b16 %v552
        %v617 = vunpack.c.l.b16 %v553
        %v618 = vunpack.c.l.b16 %v554
        %v619 = vunpack.c.l.b16 %v555
        %v620 = vunpack.c.l.b16 %v556
        %v621 = vunpack.c.l.b16 %v557
        %v622 = vunpack.c.l.b16 %v558
        %v623 = vunpack.c.l.b16 %v559
        %v624 = vunpack.c.l.b16 %v560
        %v625 = vunpack.c.l.b16 %v561
        %v626 = vunpack.c.l.b16 %v562
        %v627 = vunpack.c.l.b16 %v563
        %v628 = vunpack.c.l.b16 %v564
        %v629 = vunpack.c.l.b16 %v565
        %v630 = vunpack.c.l.b16 %v566
        %v631 = vunpack.c.l.b16 %v567
        %v632 = vunpack.c.l.b16 %v568
        %v633 = vunpack.c.l.b16 %v569
        %v634 = vunpack.c.l.b16 %v570
        %v635 = vunpack.c.l.b16 %v571
        %v636 = vunpack.c.l.b16 %v572
        %v637 = vunpack.c.l.b16 %v573
        %v638 = vunpack.c.l.b16 %v574
        %v639 = vunpack.c.l.b16 %v575
        %v640 = vpack.c.b16 %v609, %v608
        %v641 = vpack.c.b16 %v611, %v610
        %v642 = vpack.c.b16 %v613, %v612
        %v643 = vpack.c.b16 %v615, %v614
        %v644 = vpack.c.b16 %v617, %v616
        %v645 = vpack.c.b16 %v619, %v618
        %v646 = vpack.c.b16 %v621, %v620
        %v647 = vpack.c.b16 %v623, %v622
        %v648 = vpack.c.b16 %v625, %v624
        %v649 = vpack.c.b16 %v627, %v626
        %v650 = vpack.c.b16 %v629, %v628
        %v651 = vpack.c.b16 %v631, %v630
        %v652 = vpack.c.b16 %v633, %v632
        %v653 = vpack.c.b16 %v635, %v634
        %v654 = vpack.c.b16 %v637, %v636
        %v655 = vpack.c.b16 %v639, %v638
        %672 = vmatprep.subr.bf16.mxu0 0
        %673 = vmatpush1.bf16.msra.mxu0 %v647
        %674 = vmatprep.subr.bf16.mxu0 0
        %675 = vmatpush1.bf16.msra.mxu0 %v646
        %676 = vmatprep.subr.bf16.mxu0 0
        %677 = vmatpush1.bf16.msra.mxu0 %v645
        %678 = vmatprep.subr.bf16.mxu0 0
        %679 = vmatpush1.bf16.msra.mxu0 %v644
        %680 = vmatprep.subr.bf16.mxu0 0
        %681 = vmatpush1.bf16.msra.mxu0 %v643
        %682 = vmatprep.subr.bf16.mxu0 0
        %683 = vmatpush1.bf16.msra.mxu0 %v642
        %684 = vmatprep.subr.bf16.mxu0 0
        %685 = vmatpush1.bf16.msra.mxu0 %v641
        %686 = vmatprep.subr.bf16.mxu0 0
        %687 = vmatpush1.bf16.msra.mxu0 %v640
        %688 = vmatprep.subr.bf16.mxu0 0
        %689 = vmatpush2.bf16.msra.mxu0 %v655
        %690 = vmatprep.subr.bf16.mxu0 0
        %691 = vmatpush2.bf16.msra.mxu0 %v654
        %692 = vmatprep.subr.bf16.mxu0 0
        %693 = vmatpush2.bf16.msra.mxu0 %v653
        %694 = vmatprep.subr.bf16.mxu0 0
        %695 = vmatpush2.bf16.msra.mxu0 %v652
        %696 = vmatprep.subr.bf16.mxu0 0
        %697 = vmatpush2.bf16.msra.mxu0 %v651
        %698 = vmatprep.subr.bf16.mxu0 0
        %699 = vmatpush2.bf16.msra.mxu0 %v650
        %700 = vmatprep.subr.bf16.mxu0 0
        %701 = vmatpush2.bf16.msra.mxu0 %v649
        %702 = vmatprep.subr.bf16.mxu0 0
        %703 = vmatpush2.bf16.msra.mxu0 %v648
        %704 = vmatprep.mubr.bf16.mxu0 %v543
        %705 = vmatmul.mubr.bf16.gmra.mxu0 %v542
        %v706 = vpop.f32.mrf.mxu0
        %v707 = vadd.f32 0.0, %v706
        %v708 = vpop.f32.mrf.mxu0
        %v709 = vpop.f32.mrf.mxu0
        %v710 = vpop.f32.mrf.mxu0
        %711 = vdwg.mxu0
        %v712 = vadd.f32 %v250, %v707
        %713 = vst [vmem:[%s242] sm:$0xff] %v712
        %s714 = sand.u32 %s119, 1
        %s715 = scalar_lea.sflag [#allocation4], %s714
        %s716 = sand.u32 %s119, 1
        %s717 = smul.addr %s716, 8
        %s718 = scalar_lea.vmem [#allocation8], %s717
        // Predicated region
        $region49: #{tpu_custom_call.1} parent=31 // pred_check
          %p719 = pneg %p129
        $region50: #{tpu_custom_call.1} parent=31 // pred_check_branch
          %721 = sbr.rel (%p719) target = $region52
        $region51: #{tpu_custom_call.1} parent=31 // pred_region
          %s723 = ssub.s32 128, 128
          %724 = vsyncadd %s715, %s723
          %s725 = smul.addr %s25, 128
          %s726 = scalar_lea.hbm %s3, %s725
          %s728 = sshll.u32 %s718, 4
          %s729 = int_to_ptr.vmem [resolvable:$true] %s728
          %731 = dma.vmem_to_hbm [thread:$0]  %s729, 128, %s726, %s715
        $region52: #{tpu_custom_call.1} parent=31 // pred_fallthru
          _
      $region32: #{tpu_custom_call.1} parent=5 // pred_fallthru
        _
      %p732 = scmp.le.s32.totalorder 2, %s16
      // Predicated region
      $region53: #{tpu_custom_call.1} parent=5 // pred_check
        %p733 = pneg %p732
      $region54: #{tpu_custom_call.1} parent=5 // pred_check_branch
        %735 = sbr.rel (%p733) target = $region56
      $region55: #{tpu_custom_call.1} parent=5 // pred_region
        %s736 = ssub.s32 %s16, 2
        // Predicated region
        $region57: #{tpu_custom_call.1} parent=55 // pred_check
          %p737 = pneg %p135
        $region58: #{tpu_custom_call.1} parent=55 // pred_check_branch
          %739 = sbr.rel (%p737) target = $region60
        $region59: #{tpu_custom_call.1} parent=55 // pred_region
          %s740 = sand.u32 %s120, 1
          %s741 = scalar_lea.sflag [#allocation4], %s740
          %s742 = sand.u32 %s120, 1
          %s743 = smul.addr %s742, 8
          %s744 = scalar_lea.vmem [#allocation8], %s743
          %745 = dma.done %s741, 128
        $region60: #{tpu_custom_call.1} parent=55 // pred_fallthru
          _
      $region56: #{tpu_custom_call.1} parent=5 // pred_fallthru
        _
    $region6: #{tpu_custom_call.1} parent=1 // loop_footer
      %s20 = sadd.s32 1, %s16
    $region7: #{tpu_custom_call.1} parent=1 // loop_footer_branch
      %15 = sbr.rel target = $region3
    $region8: #{tpu_custom_call.1} parent=1 // loop_exit
      _
    %746 = vsyncpa [#allocation3], 1
    %s747 = scalar_lea.sflag [#allocation3], 1
    %748 = vsyncpa %s747, 1
    %749 = vsyncpa [#allocation6], 1
    %750 = vsyncpa [#allocation4], 1
    %s751 = scalar_lea.sflag [#allocation4], 1
    %752 = vsyncpa %s751, 1

</llo_original>
